<compile_context>
chip_gen: v7x
topology: tpu7x:2x2x1
jax: 0.10.0
libtpu: 0.0.40
codegen_flags: <defaults>
</compile_context>

<pallas_src>
import jax
import jax.numpy as jnp
from jax.experimental import pallas as pl
from jax.experimental.pallas import tpu as pltpu

SPHERE_RADIUS = 1.0

LANE = 512      # points per lane-row (multiple of 128 -> lane-dense)
MAX_TR = 512    # sublane rows per tile -> up to 262144 points / grid step
                #   x+x0+out double-buffered ~= 22 MiB at TR=512


def _hardbc_kernel(x_ref, x0_ref, off_ref, o_ref):
    # x_ref  : (4, TR, 512) VMEM  network outputs (u, v, w, p), dense slabs
    # x0_ref : (3, TR, 512) VMEM  spatial coordinates, dense slabs
    # off_ref: (4,)        SMEM  boundary offsets (scalar adds)
    # o_ref  : (4, TR, 512) VMEM  output
    x0_0 = x0_ref[0]
    x0_1 = x0_ref[1]
    x0_2 = x0_ref[2]

    # bc_fun(x0) = R - ||x0||, clamped at 0 (mirrors torch.maximum(bc_fun, 0)).
    # All VPU work on full (TR, 512) slabs; no cross-lane (XLU) reduction.
    sq = x0_0 * x0_0 + x0_1 * x0_1 + x0_2 * x0_2              # (TR, 512)
    sdf = jnp.maximum(SPHERE_RADIUS - jnp.sqrt(sq), 0.0)      # (TR, 512)
    # NOTE: forward-only; if a VJP is ever added, guard sqrt at 0.

    # Velocities (u, v, w) scaled by sdf; pressure passes through.
    # Each store is a full, unmasked, sublane/lane-dense slab store.
    o_ref[0] = x_ref[0] * sdf + off_ref[0]
    o_ref[1] = x_ref[1] * sdf + off_ref[1]
    o_ref[2] = x_ref[2] * sdf + off_ref[2]
    o_ref[3] = x_ref[3] + off_ref[3]


def _choose_tiling(n_points, max_tr=MAX_TR):
    """Pick (grid_steps, rows_per_tile, padded_rows) with <~2% padding."""
    rows = pl.cdiv(n_points, LANE)                 # 512-lane rows needed
    steps = pl.cdiv(rows, max_tr)                  # grid length
    tr = ((pl.cdiv(rows, steps) + 7) // 8) * 8     # rows / tile, multiple of 8
    return steps, tr, steps * tr


def hardbc_forward_soa(x_soa, x0_soa, offset, *, tr=None):
    """Production path (feature-major SoA, kept end-to-end).

    x_soa:  (4, N) float32   network outputs (u, v, w, p)
    x0_soa: (3, N) float32   spatial coordinates
    offset: (4,)   float32   boundary values
    returns (4, N) float32

    Zero-copy (no pad, free reshape) whenever N is a multiple of the tile
    size (e.g. any multiple of 4096 for small N, 262144 for large N).
    """
    f, n = x_soa.shape
    assert f == 4 and x0_soa.shape == (3, n) and offset.shape[-1] == 4

    if tr is None:
        steps, tr, rows_p = _choose_tiling(n)
    else:
        assert tr % 8 == 0
        rows = pl.cdiv(n, LANE)
        steps = pl.cdiv(rows, tr)
        rows_p = steps * tr
    n_p = rows_p * LANE

    x_soa = x_soa.astype(jnp.float32)
    x0_soa = x0_soa.astype(jnp.float32)
    if n_p != n:
        # One extra HBM pass; size collocation batches to a tile multiple to
        # stay on the zero-copy path.
        x_soa = jnp.pad(x_soa, ((0, 0), (0, n_p - n)))
        x0_soa = jnp.pad(x0_soa, ((0, 0), (0, n_p - n)))

    x3 = x_soa.reshape(4, rows_p, LANE)     # free row-major reshape (view)
    x03 = x0_soa.reshape(3, rows_p, LANE)
    off = offset.reshape(4).astype(jnp.float32)

    out3 = pl.pallas_call(
        _hardbc_kernel,
        out_shape=jax.ShapeDtypeStruct((4, rows_p, LANE), jnp.float32),
        grid_spec=pltpu.PrefetchScalarGridSpec(
            num_scalar_prefetch=0,
            grid=(steps,),
            in_specs=[
                pl.BlockSpec((4, tr, LANE), lambda i: (0, i, 0)),
                pl.BlockSpec((3, tr, LANE), lambda i: (0, i, 0)),
                pl.BlockSpec(memory_space=pltpu.MemorySpace.SMEM),  # offsets
            ],
            out_specs=pl.BlockSpec((4, tr, LANE), lambda i: (0, i, 0)),
        ),
        compiler_params=pltpu.CompilerParams(
            dimension_semantics=("parallel",),      # megacore sharding
            vmem_limit_bytes=48 * 1024 * 1024,      # explicit (v5e default 16 MiB)
        ),
    )(x3, x03, off)

    out = out3.reshape(4, n_p)
    return out if n_p == n else out[:, :n]


def hardbc_forward(x, x0, offset, *, tr=None):
    """PyTorch-layout compatibility wrapper: x (N, 4), x0 (N, 3) -> (N, 4).

    The transposes here are layout plumbing (extra HBM passes).  Production
    callers should keep the SoA layout and call hardbc_forward_soa directly
    (or do this transpose once upstream, not per call).
    """
    return hardbc_forward_soa(x.T, x0.T, offset, tr=tr).T


def hardbc_reference(x, x0, offset):
    # Pure-JAX reference mirroring the PyTorch forward (AoS layout).
    sdf = jnp.maximum(SPHERE_RADIUS - jnp.linalg.norm(x0, axis=-1), 0.0)
    l = jnp.stack((sdf, sdf, sdf, jnp.ones_like(sdf)), axis=1)
    return x * l + offset[None, :]


if __name__ == "__main__":
    key = jax.random.PRNGKey(0)
    k1, k2, k3, k4 = jax.random.split(key, 4)

    # nn.Parameter `offset` (requires_grad=False)
    offset = jnp.array([0.1, -0.2, 0.3, 0.0], dtype=jnp.float32)

    # 1) SoA production path, zero-copy shape (N multiple of 8*512).
    n1 = 4096
    x_soa = jax.random.normal(k1, (4, n1), dtype=jnp.float32)
    x0_soa = jax.random.normal(k2, (3, n1), dtype=jnp.float32)
    out1 = jax.block_until_ready(hardbc_forward_soa(x_soa, x0_soa, offset))
    ref1 = hardbc_reference(x_soa.T, x0_soa.T, offset)
    assert out1.shape == (4, n1)
    assert jnp.allclose(out1.T, ref1, atol=1e-5, rtol=1e-5)

    # 2) Multi-step grid (exercise pipelining / resident offsets) via small tr.
    n2 = 8192
    x_soa2 = jax.random.normal(k3, (4, n2), dtype=jnp.float32)
    x0_soa2 = jax.random.normal(k4, (3, n2), dtype=jnp.float32)
    out2 = jax.block_until_ready(hardbc_forward_soa(x_soa2, x0_soa2, offset, tr=8))
    ref2 = hardbc_reference(x_soa2.T, x0_soa2.T, offset)
    assert jnp.allclose(out2.T, ref2, atol=1e-5, rtol=1e-5)

    # 3) PyTorch-layout wrapper with N not a multiple of anything (pad path).
    n3 = 300
    x_aos = jax.random.normal(k1, (n3, 4), dtype=jnp.float32)
    x0_aos = jax.random.normal(k2, (n3, 3), dtype=jnp.float32)
    out3 = jax.block_until_ready(hardbc_forward(x_aos, x0_aos, offset))
    ref3 = hardbc_reference(x_aos, x0_aos, offset)
    assert out3.shape == (n3, 4)
    assert jnp.allclose(out3, ref3, atol=1e-5, rtol=1e-5)

    print("KERNEL_OK")
</pallas_src>

<mosaic_0001>
module attributes {stable_mosaic.version = 11 : i64} {
  func.func @_hardbc_kernel(%arg0: i32, %arg1: memref<4x8x512xf32, #tpu.memory_space<vmem>>, %arg2: memref<3x8x512xf32, #tpu.memory_space<vmem>>, %arg3: memref<4xf32, #tpu.memory_space<smem>>, %arg4: memref<4x8x512xf32, #tpu.memory_space<vmem>>) attributes {dimension_semantics = [#tpu.dimension_semantics<parallel>], iteration_bounds = array<i64: 1>, scalar_prefetch = 0 : i64, scratch_operands = 0 : i64, tpu.core_type = #tpu.core_type<tc>, window_params = [{transform_indices = @transform_0, window_bounds = array<i64: 4, 8, 512>}, {transform_indices = @transform_1, window_bounds = array<i64: 3, 8, 512>}, {transform_indices = @transform_2, window_bounds = array<i64: 4>}, {transform_indices = @transform_3, window_bounds = array<i64: 4, 8, 512>}]} {
    %c0 = arith.constant 0 : index
    %c0_0 = arith.constant 0 : index
    %c0_1 = arith.constant 0 : index
    %0 = vector.load %arg2[%c0, %c0_0, %c0_1] : memref<3x8x512xf32, #tpu.memory_space<vmem>>, vector<1x8x512xf32>
    %1 = vector.shape_cast %0 : vector<1x8x512xf32> to vector<8x512xf32>
    %c1 = arith.constant 1 : index
    %c0_2 = arith.constant 0 : index
    %c0_3 = arith.constant 0 : index
    %2 = vector.load %arg2[%c1, %c0_2, %c0_3] : memref<3x8x512xf32, #tpu.memory_space<vmem>>, vector<1x8x512xf32>
    %3 = vector.shape_cast %2 : vector<1x8x512xf32> to vector<8x512xf32>
    %c2 = arith.constant 2 : index
    %c0_4 = arith.constant 0 : index
    %c0_5 = arith.constant 0 : index
    %4 = vector.load %arg2[%c2, %c0_4, %c0_5] : memref<3x8x512xf32, #tpu.memory_space<vmem>>, vector<1x8x512xf32>
    %5 = vector.shape_cast %4 : vector<1x8x512xf32> to vector<8x512xf32>
    %6 = arith.mulf %1, %1 : vector<8x512xf32>
    %7 = arith.mulf %3, %3 : vector<8x512xf32>
    %8 = arith.addf %6, %7 : vector<8x512xf32>
    %9 = arith.mulf %5, %5 : vector<8x512xf32>
    %10 = arith.addf %8, %9 : vector<8x512xf32>
    %11 = math.sqrt %10 : vector<8x512xf32>
    %cst = arith.constant 1.000000e+00 : f32
    %12 = vector.broadcast %cst : f32 to vector<8x512xf32>
    %13 = arith.subf %12, %11 : vector<8x512xf32>
    %cst_6 = arith.constant 0.000000e+00 : f32
    %14 = vector.broadcast %cst_6 : f32 to vector<8x512xf32>
    %15 = arith.maximumf %13, %14 : vector<8x512xf32>
    %c0_7 = arith.constant 0 : index
    %c0_8 = arith.constant 0 : index
    %c0_9 = arith.constant 0 : index
    %16 = vector.load %arg1[%c0_7, %c0_8, %c0_9] : memref<4x8x512xf32, #tpu.memory_space<vmem>>, vector<1x8x512xf32>
    %17 = vector.shape_cast %16 : vector<1x8x512xf32> to vector<8x512xf32>
    %18 = arith.mulf %17, %15 : vector<8x512xf32>
    %c0_10 = arith.constant 0 : index
    %19 = memref.load %arg3[%c0_10] : memref<4xf32, #tpu.memory_space<smem>>
    %20 = vector.broadcast %19 : f32 to vector<8x512xf32>
    %21 = arith.addf %18, %20 : vector<8x512xf32>
    %c0_11 = arith.constant 0 : index
    %c0_12 = arith.constant 0 : index
    %c0_13 = arith.constant 0 : index
    %22 = vector.load %arg4[%c0_11, %c0_12, %c0_13] : memref<4x8x512xf32, #tpu.memory_space<vmem>>, vector<1x8x512xf32>
    %23 = vector.shape_cast %22 : vector<1x8x512xf32> to vector<8x512xf32>
    %24 = vector.shape_cast %21 : vector<8x512xf32> to vector<1x8x512xf32>
    tpu.vector_store %arg4[%c0_11, %c0_12, %c0_13], %24 {strides = array<i32>} : memref<4x8x512xf32, #tpu.memory_space<vmem>>, vector<1x8x512xf32>,
    %c1_14 = arith.constant 1 : index
    %c0_15 = arith.constant 0 : index
    %c0_16 = arith.constant 0 : index
    %25 = vector.load %arg1[%c1_14, %c0_15, %c0_16] : memref<4x8x512xf32, #tpu.memory_space<vmem>>, vector<1x8x512xf32>
    %26 = vector.shape_cast %25 : vector<1x8x512xf32> to vector<8x512xf32>
    %27 = arith.mulf %26, %15 : vector<8x512xf32>
    %c1_17 = arith.constant 1 : index
    %28 = memref.load %arg3[%c1_17] : memref<4xf32, #tpu.memory_space<smem>>
    %29 = vector.broadcast %28 : f32 to vector<8x512xf32>
    %30 = arith.addf %27, %29 : vector<8x512xf32>
    %c1_18 = arith.constant 1 : index
    %c0_19 = arith.constant 0 : index
    %c0_20 = arith.constant 0 : index
    %31 = vector.load %arg4[%c1_18, %c0_19, %c0_20] : memref<4x8x512xf32, #tpu.memory_space<vmem>>, vector<1x8x512xf32>
    %32 = vector.shape_cast %31 : vector<1x8x512xf32> to vector<8x512xf32>
    %33 = vector.shape_cast %30 : vector<8x512xf32> to vector<1x8x512xf32>
    tpu.vector_store %arg4[%c1_18, %c0_19, %c0_20], %33 {strides = array<i32>} : memref<4x8x512xf32, #tpu.memory_space<vmem>>, vector<1x8x512xf32>,
    %c2_21 = arith.constant 2 : index
    %c0_22 = arith.constant 0 : index
    %c0_23 = arith.constant 0 : index
    %34 = vector.load %arg1[%c2_21, %c0_22, %c0_23] : memref<4x8x512xf32, #tpu.memory_space<vmem>>, vector<1x8x512xf32>
    %35 = vector.shape_cast %34 : vector<1x8x512xf32> to vector<8x512xf32>
    %36 = arith.mulf %35, %15 : vector<8x512xf32>
    %c2_24 = arith.constant 2 : index
    %37 = memref.load %arg3[%c2_24] : memref<4xf32, #tpu.memory_space<smem>>
    %38 = vector.broadcast %37 : f32 to vector<8x512xf32>
    %39 = arith.addf %36, %38 : vector<8x512xf32>
    %c2_25 = arith.constant 2 : index
    %c0_26 = arith.constant 0 : index
    %c0_27 = arith.constant 0 : index
    %40 = vector.load %arg4[%c2_25, %c0_26, %c0_27] : memref<4x8x512xf32, #tpu.memory_space<vmem>>, vector<1x8x512xf32>
    %41 = vector.shape_cast %40 : vector<1x8x512xf32> to vector<8x512xf32>
    %42 = vector.shape_cast %39 : vector<8x512xf32> to vector<1x8x512xf32>
    tpu.vector_store %arg4[%c2_25, %c0_26, %c0_27], %42 {strides = array<i32>} : memref<4x8x512xf32, #tpu.memory_space<vmem>>, vector<1x8x512xf32>,
    %c3 = arith.constant 3 : index
    %c0_28 = arith.constant 0 : index
    %c0_29 = arith.constant 0 : index
    %43 = vector.load %arg1[%c3, %c0_28, %c0_29] : memref<4x8x512xf32, #tpu.memory_space<vmem>>, vector<1x8x512xf32>
    %44 = vector.shape_cast %43 : vector<1x8x512xf32> to vector<8x512xf32>
    %c3_30 = arith.constant 3 : index
    %45 = memref.load %arg3[%c3_30] : memref<4xf32, #tpu.memory_space<smem>>
    %46 = vector.broadcast %45 : f32 to vector<8x512xf32>
    %47 = arith.addf %44, %46 : vector<8x512xf32>
    %c3_31 = arith.constant 3 : index
    %c0_32 = arith.constant 0 : index
    %c0_33 = arith.constant 0 : index
    %48 = vector.load %arg4[%c3_31, %c0_32, %c0_33] : memref<4x8x512xf32, #tpu.memory_space<vmem>>, vector<1x8x512xf32>
    %49 = vector.shape_cast %48 : vector<1x8x512xf32> to vector<8x512xf32>
    %50 = vector.shape_cast %47 : vector<8x512xf32> to vector<1x8x512xf32>
    tpu.vector_store %arg4[%c3_31, %c0_32, %c0_33], %50 {strides = array<i32>} : memref<4x8x512xf32, #tpu.memory_space<vmem>>, vector<1x8x512xf32>,
    return
  }
  func.func @transform_0(%arg0: i32) -> (i32, i32, i32) {
    %c0_i32 = arith.constant 0 : i32
    %c0_i32_0 = arith.constant 0 : i32
    %c0_i32_1 = arith.constant 0 : i32
    return %c0_i32, %arg0, %c0_i32_0 : i32, i32, i32
  }
  func.func @transform_1(%arg0: i32) -> (i32, i32, i32) {
    %c0_i32 = arith.constant 0 : i32
    %c0_i32_0 = arith.constant 0 : i32
    %c0_i32_1 = arith.constant 0 : i32
    return %c0_i32, %arg0, %c0_i32_0 : i32, i32, i32
  }
  func.func @transform_2(%arg0: i32) -> i32 {
    %c0_i32 = arith.constant 0 : i32
    %c0_i32_0 = arith.constant 0 : i32
    return %c0_i32 : i32
  }
  func.func @transform_3(%arg0: i32) -> (i32, i32, i32) {
    %c0_i32 = arith.constant 0 : i32
    %c0_i32_0 = arith.constant 0 : i32
    %c0_i32_1 = arith.constant 0 : i32
    return %c0_i32, %arg0, %c0_i32_0 : i32, i32, i32
  }
}

</mosaic_0001>

<llo_original>
// kernel: tpu_custom_call.1
$region0: #{tpu_custom_call.1}
  #allocation0 [shape = 'u32[]', space=smem, size = 0x4, offset = 0x4, fixed_abs, tag = 'smem constant byte address 0x4 - core index']
  #allocation1 [shape = 'u32[144,128]{1,0:T(1,128)}', space=vmem, size = 0x12000, scoped, tag = 'internal scratch']
  %s0 = inlined_call_operand.hbm [shape: f32[4,8,512], index: 0, kind: input, shape index: {}]
  %s1 = inlined_call_operand.hbm [shape: f32[3,8,512], index: 1, kind: input, shape index: {}]
  %s2 = inlined_call_operand.vmem [shape: f32[4], index: 2, kind: input, shape index: {}]
  %s3 = inlined_call_operand.hbm [shape: f32[4,8,512], index: 3, kind: output, shape index: {}]
  %s4 = sld [smem:[#allocation0]]
  $region34: #{tpu_custom_call.1} parent=0
    _
  %s6 = ssub.s32 1, %s4
  %s7 = scalar_select 0, %s6, %s4
  $region1: #{tpu_custom_call.1} parent=0
    #allocation2 [shape = 'u8[65536]{0}', space=vmem, size = 0x10000, scoped, tag = 'input window, operand 0, single buffered']
    #allocation3 [shape = 's32[1]{0}', space=sflag, size = 0x4, scoped, tag = 'scoped memory for tpu_custom_call.1']
    #allocation4 [shape = 's32[1]{0}', space=sflag, size = 0x4, scoped, tag = 'scoped memory for tpu_custom_call.1']
    #allocation5 [shape = 's32[1]{0}', space=sflag, size = 0x4, scoped, tag = 'scoped memory for tpu_custom_call.1']
    #allocation6 [shape = 'u8[49152]{0}', space=vmem, size = 0xc000, scoped, tag = 'input window, operand 1, single buffered']
    #allocation7 [shape = 's32[1]{0}', space=sflag, size = 0x4, scoped, tag = 'scoped memory for tpu_custom_call.1']
    #allocation8 [shape = 'u8[512]{0}', space=smem, size = 0x200, scoped, tag = 'input window, operand 2, single buffered']
    #allocation9 [shape = 'u8[65536]{0}', space=vmem, size = 0x10000, scoped, tag = 'output window, operand 0, single buffered']
    %8 = vsyncpa [#allocation3], 0
    %9 = vsyncpa [#allocation7], 0
    %10 = vsyncpa [#allocation5], 0
    %11 = vsyncpa [#allocation4], 0
    // Predicated region
    $region2: #{tpu_custom_call.1} parent=1 // pred_check
      _
    $region3: #{tpu_custom_call.1} parent=1 // pred_check_branch
      %13 = sbr.rel (0) target = $region5
    $region4: #{tpu_custom_call.1} parent=1 // pred_region
      %s15 = ssub.s32 2048, 2048
      %16 = vsyncadd [#allocation3], %s15
      %s17 = sshll.u32 [#allocation2], 4
      %s18 = int_to_ptr.vmem [resolvable:$true] %s17
      %23 = dma.hbm_to_vmem [thread:$0]  %s0, 2048, %s18, [#allocation3], 512, 512, 32
    $region5: #{tpu_custom_call.1} parent=1 // pred_fallthru
      _
    // Predicated region
    $region6: #{tpu_custom_call.1} parent=1 // pred_check
      _
    $region7: #{tpu_custom_call.1} parent=1 // pred_check_branch
      %25 = sbr.rel (0) target = $region9
    $region8: #{tpu_custom_call.1} parent=1 // pred_region
      %s27 = ssub.s32 1536, 1536
      %28 = vsyncadd [#allocation7], %s27
      %s29 = sshll.u32 [#allocation6], 4
      %s30 = int_to_ptr.vmem [resolvable:$true] %s29
      %35 = dma.hbm_to_vmem [thread:$0]  %s1, 1536, %s30, [#allocation7], 512, 512, 32
    $region9: #{tpu_custom_call.1} parent=1 // pred_fallthru
      _
    // Predicated region
    $region10: #{tpu_custom_call.1} parent=1 // pred_check
      _
    $region11: #{tpu_custom_call.1} parent=1 // pred_check_branch
      %37 = sbr.rel (0) target = $region13
    $region12: #{tpu_custom_call.1} parent=1 // pred_region
      %s39 = ssub.s32 16, 16
      %40 = vsyncadd [#allocation5], %s39
      %s42 = sshll.u32 %s2, 4
      %s43 = int_to_ptr.vmem [resolvable:$true] %s42
      %45 = dma.vmem_to_smem %s43, 16, [#allocation8], [#allocation5]
    $region13: #{tpu_custom_call.1} parent=1 // pred_fallthru
      _
    // Predicated region
    $region14: #{tpu_custom_call.1} parent=1 // pred_check
      _
    $region15: #{tpu_custom_call.1} parent=1 // pred_check_branch
      %47 = sbr.rel (0) target = $region17
    $region16: #{tpu_custom_call.1} parent=1 // pred_region
      %48 = dma.done [#allocation3], 2048
    $region17: #{tpu_custom_call.1} parent=1 // pred_fallthru
      _
    // Predicated region
    $region18: #{tpu_custom_call.1} parent=1 // pred_check
      _
    $region19: #{tpu_custom_call.1} parent=1 // pred_check_branch
      %50 = sbr.rel (0) target = $region21
    $region20: #{tpu_custom_call.1} parent=1 // pred_region
      %51 = dma.done [#allocation7], 1536
    $region21: #{tpu_custom_call.1} parent=1 // pred_fallthru
      _
    // Predicated region
    $region22: #{tpu_custom_call.1} parent=1 // pred_check
      _
    $region23: #{tpu_custom_call.1} parent=1 // pred_check_branch
      %53 = sbr.rel (0) target = $region25
    $region24: #{tpu_custom_call.1} parent=1 // pred_region
      %54 = dma.done [#allocation5], 16
    $region25: #{tpu_custom_call.1} parent=1 // pred_fallthru
      _
    %55 = sfence
    %v56 = vld [vmem:[#allocation6] sm:$0xff]
    %v57 = vld [vmem:[#allocation6 + $0x8] sm:$0xff]
    %v58 = vld [vmem:[#allocation6 + $0x10] sm:$0xff]
    %v59 = vld [vmem:[#allocation6 + $0x18] sm:$0xff]
    %s60 = scalar_lea.vmem [#allocation6], 32
    %v61 = vld [vmem:[%s60] sm:$0xff]
    %v62 = vld [vmem:[%s60 + $0x8] sm:$0xff]
    %v63 = vld [vmem:[%s60 + $0x10] sm:$0xff]
    %v64 = vld [vmem:[%s60 + $0x18] sm:$0xff]
    %s65 = scalar_lea.vmem [#allocation6], 64
    %v66 = vld [vmem:[%s65] sm:$0xff]
    %v67 = vld [vmem:[%s65 + $0x8] sm:$0xff]
    %v68 = vld [vmem:[%s65 + $0x10] sm:$0xff]
    %v69 = vld [vmem:[%s65 + $0x18] sm:$0xff]
    %v70 = vmul.f32 %v56, %v56
    %v71 = vmul.f32 %v57, %v57
    %v72 = vmul.f32 %v58, %v58
    %v73 = vmul.f32 %v59, %v59
    %v74 = vmul.f32 %v61, %v61
    %v75 = vmul.f32 %v62, %v62
    %v76 = vmul.f32 %v63, %v63
    %v77 = vmul.f32 %v64, %v64
    %v78 = vadd.f32 %v70, %v74
    %v79 = vadd.f32 %v71, %v75
    %v80 = vadd.f32 %v72, %v76
    %v81 = vadd.f32 %v73, %v77
    %v82 = vmul.f32 %v66, %v66
    %v83 = vmul.f32 %v67, %v67
    %v84 = vmul.f32 %v68, %v68
    %v85 = vmul.f32 %v69, %v69
    %v86 = vadd.f32 %v78, %v82
    %v87 = vadd.f32 %v79, %v83
    %v88 = vadd.f32 %v80, %v84
    %v89 = vadd.f32 %v81, %v85
    %v90 = vrsqrt.pop %v86
    %v91 = vmul.f32 %v86, %v90
    %vm92 = vcmp.eq.f32.partialorder %v86, inf
    %v93 = vsel %vm92, %v86, %v91
    %vm94 = vcmp.eq.f32.partialorder %v86, 0.0
    %v95 = vand.u32 %v86, 2147483648
    %v96 = vsel %vm94, %v95, %v93
    %v97 = vrsqrt.pop %v87
    %v98 = vmul.f32 %v87, %v97
    %vm99 = vcmp.eq.f32.partialorder %v87, inf
    %v100 = vsel %vm99, %v87, %v98
    %vm101 = vcmp.eq.f32.partialorder %v87, 0.0
    %v102 = vand.u32 %v87, 2147483648
    %v103 = vsel %vm101, %v102, %v100
    %v104 = vrsqrt.pop %v88
    %v105 = vmul.f32 %v88, %v104
    %vm106 = vcmp.eq.f32.partialorder %v88, inf
    %v107 = vsel %vm106, %v88, %v105
    %vm108 = vcmp.eq.f32.partialorder %v88, 0.0
    %v109 = vand.u32 %v88, 2147483648
    %v110 = vsel %vm108, %v109, %v107
    %v111 = vrsqrt.pop %v89
    %v112 = vmul.f32 %v89, %v111
    %vm113 = vcmp.eq.f32.partialorder %v89, inf
    %v114 = vsel %vm113, %v89, %v112
    %vm115 = vcmp.eq.f32.partialorder %v89, 0.0
    %v116 = vand.u32 %v89, 2147483648
    %v117 = vsel %vm115, %v116, %v114
    %v118 = vsub.f32 1.0, %v96
    %v119 = vsub.f32 1.0, %v103
    %v120 = vsub.f32 1.0, %v110
    %v121 = vsub.f32 1.0, %v117
    %v122 = vmax.f32 %v118, 0.0
    %v123 = vmax.f32 %v119, 0.0
    %v124 = vmax.f32 %v120, 0.0
    %v125 = vmax.f32 %v121, 0.0
    %v126 = vld [vmem:[#allocation2] sm:$0xff]
    %v127 = vld [vmem:[#allocation2 + $0x8] sm:$0xff]
    %v128 = vld [vmem:[#allocation2 + $0x10] sm:$0xff]
    %v129 = vld [vmem:[#allocation2 + $0x18] sm:$0xff]
    %v130 = vmul.f32 %v126, %v122
    %v131 = vmul.f32 %v127, %v123
    %v132 = vmul.f32 %v128, %v124
    %v133 = vmul.f32 %v129, %v125
    %s134 = sld [smem:[#allocation8]]
    %v135 = vstv %s134
    %v136 = vadd.f32 %v130, %v135
    %v137 = vadd.f32 %v131, %v135
    %v138 = vadd.f32 %v132, %v135
    %v139 = vadd.f32 %v133, %v135
    %140 = vst [vmem:[#allocation9] sm:$0xff] %v136
    %141 = vst [vmem:[#allocation9 + $0x8] sm:$0xff] %v137
    %142 = vst [vmem:[#allocation9 + $0x10] sm:$0xff] %v138
    %143 = vst [vmem:[#allocation9 + $0x18] sm:$0xff] %v139
    %s144 = scalar_lea.vmem [#allocation2], 32
    %v145 = vld [vmem:[%s144] sm:$0xff]
    %v146 = vld [vmem:[%s144 + $0x8] sm:$0xff]
    %v147 = vld [vmem:[%s144 + $0x10] sm:$0xff]
    %v148 = vld [vmem:[%s144 + $0x18] sm:$0xff]
    %v149 = vmul.f32 %v145, %v122
    %v150 = vmul.f32 %v146, %v123
    %v151 = vmul.f32 %v147, %v124
    %v152 = vmul.f32 %v148, %v125
    %s153 = sld [smem:[#allocation8 + $0x1]]
    %v154 = vstv %s153
    %v155 = vadd.f32 %v149, %v154
    %v156 = vadd.f32 %v150, %v154
    %v157 = vadd.f32 %v151, %v154
    %v158 = vadd.f32 %v152, %v154
    %s159 = scalar_lea.vmem [#allocation9], 32
    %160 = vst [vmem:[%s159] sm:$0xff] %v155
    %161 = vst [vmem:[%s159 + $0x8] sm:$0xff] %v156
    %162 = vst [vmem:[%s159 + $0x10] sm:$0xff] %v157
    %163 = vst [vmem:[%s159 + $0x18] sm:$0xff] %v158
    %s164 = scalar_lea.vmem [#allocation2], 64
    %v165 = vld [vmem:[%s164] sm:$0xff]
    %v166 = vld [vmem:[%s164 + $0x8] sm:$0xff]
    %v167 = vld [vmem:[%s164 + $0x10] sm:$0xff]
    %v168 = vld [vmem:[%s164 + $0x18] sm:$0xff]
    %v169 = vmul.f32 %v165, %v122
    %v170 = vmul.f32 %v166, %v123
    %v171 = vmul.f32 %v167, %v124
    %v172 = vmul.f32 %v168, %v125
    %s173 = sld [smem:[#allocation8 + $0x2]]
    %v174 = vstv %s173
    %v175 = vadd.f32 %v169, %v174
    %v176 = vadd.f32 %v170, %v174
    %v177 = vadd.f32 %v171, %v174
    %v178 = vadd.f32 %v172, %v174
    %s179 = scalar_lea.vmem [#allocation9], 64
    %180 = vst [vmem:[%s179] sm:$0xff] %v175
    %181 = vst [vmem:[%s179 + $0x8] sm:$0xff] %v176
    %182 = vst [vmem:[%s179 + $0x10] sm:$0xff] %v177
    %183 = vst [vmem:[%s179 + $0x18] sm:$0xff] %v178
    %s184 = scalar_lea.vmem [#allocation2], 96
    %v185 = vld [vmem:[%s184] sm:$0xff]
    %v186 = vld [vmem:[%s184 + $0x8] sm:$0xff]
    %v187 = vld [vmem:[%s184 + $0x10] sm:$0xff]
    %v188 = vld [vmem:[%s184 + $0x18] sm:$0xff]
    %s189 = sld [smem:[#allocation8 + $0x3]]
    %v190 = vstv %s189
    %v191 = vadd.f32 %v185, %v190
    %v192 = vadd.f32 %v186, %v190
    %v193 = vadd.f32 %v187, %v190
    %v194 = vadd.f32 %v188, %v190
    %s195 = scalar_lea.vmem [#allocation9], 96
    %196 = vst [vmem:[%s195] sm:$0xff] %v191
    %197 = vst [vmem:[%s195 + $0x8] sm:$0xff] %v192
    %198 = vst [vmem:[%s195 + $0x10] sm:$0xff] %v193
    %199 = vst [vmem:[%s195 + $0x18] sm:$0xff] %v194
    // Predicated region
    $region26: #{tpu_custom_call.1} parent=1 // pred_check
      _
    $region27: #{tpu_custom_call.1} parent=1 // pred_check_branch
      %201 = sbr.rel (0) target = $region29
    $region28: #{tpu_custom_call.1} parent=1 // pred_region
      %s203 = ssub.s32 2048, 2048
      %204 = vsyncadd [#allocation4], %s203
      %s205 = sshll.u32 [#allocation9], 4
      %s206 = int_to_ptr.vmem [resolvable:$true] %s205
      %211 = dma.vmem_to_hbm [thread:$0]  %s206, 2048, %s3, [#allocation4], 512, 512, 32
    $region29: #{tpu_custom_call.1} parent=1 // pred_fallthru
      _
    // Predicated region
    $region30: #{tpu_custom_call.1} parent=1 // pred_check
      _
    $region31: #{tpu_custom_call.1} parent=1 // pred_check_branch
      %213 = sbr.rel (0) target = $region33
    $region32: #{tpu_custom_call.1} parent=1 // pred_region
      %214 = dma.done [#allocation4], 2048
    $region33: #{tpu_custom_call.1} parent=1 // pred_fallthru
      _
    %215 = vsyncpa [#allocation3], 1
    %216 = vsyncpa [#allocation7], 1
    %217 = vsyncpa [#allocation4], 1
    %218 = vsyncpa [#allocation5], 1

</llo_original>
